<compile_context>
chip_gen: v7x
topology: tpu7x:2x2x1
jax: 0.10.0
libtpu: 0.0.40
codegen_flags: <defaults>
</compile_context>

<pallas_src>
from functools import partial

import jax
import jax.numpy as jnp
from jax.experimental import pallas as pl
from jax.experimental.pallas import tpu as pltpu

_LANE = 128
_SUB = 8
# (2048, 128) f32 = 1 MiB per input tile. 2 inputs x 2 buffers = 4 MiB VMEM,
# plus in-kernel elementwise temporaries, stays well under the default scoped
# VMEM limit on v5e (16 MiB), v6e (32 MiB) and v7x (32 MiB).
_DEFAULT_BLOCK_ROWS = 2048


def _bce_partial_kernel(p_ref, t_ref, sum_ref, cnt_ref, *,
                        ignore_label, block_rows, n_rows, mask_rows):
    # Cast to f32 in-kernel so bf16 inputs only move half the HBM bytes
    # (no-op for f32 inputs). All math stays in f32 (v5e has no bf16 VPU/EUP).
    x = p_ref[...].astype(jnp.float32)   # logits  (block_rows, 128)
    z = t_ref[...].astype(jnp.float32)   # targets (block_rows, 128)

    valid = jnp.logical_and(z >= 0.0, z != ignore_label)
    if mask_rows:
        # The last grid step hangs over the end of the (n_rows, 128) array;
        # the overhanging rows contain unspecified data, so mask them out.
        row = (jax.lax.broadcasted_iota(jnp.int32, x.shape, 0)
               + pl.program_id(0) * block_rows)
        valid = jnp.logical_and(valid, row < n_rows)

    # Numerically stable BCE-with-logits:
    #   l = max(x, 0) - x*z + log1p(exp(-|x|))
    loss = jnp.maximum(x, 0.0) - x * z + jnp.log1p(jnp.exp(-jnp.abs(x)))
    loss = jnp.where(valid, loss, 0.0)

    # (block_rows, 128) -> (block_rows//8, 8, 128) is a pure vreg relabeling;
    # the axis-0 sum is elementwise vreg adds on the VPU (no per-step XLU
    # cross-lane reduce). One (8, 128) partial per output per grid step.
    sub = block_rows // _SUB
    sum_ref[...] = jnp.sum(loss.reshape(sub, _SUB, _LANE), axis=0)
    cnt_ref[...] = jnp.sum(valid.astype(jnp.int32).reshape(sub, _SUB, _LANE),
                           axis=0)


def bce_with_logits_loss_2d(predict, target, weight=None, size_average=True,
                            ignore_label=255, block_rows=_DEFAULT_BLOCK_ROWS):
    """JAX/Pallas equivalent of BCEWithLogitsLoss2d.forward."""
    assert predict.ndim == 4 and target.ndim == 4
    assert predict.shape[0] == target.shape[0]
    assert predict.shape[2] == target.shape[2]
    assert predict.shape[3] == target.shape[3]
    # TODO(synk): per-class `weight` rescaling is not supported (weight=None only).
    assert weight is None

    flat_p = predict.reshape(-1)
    flat_t = target.reshape(-1)
    total = flat_p.shape[0]

    # Reshape to a lane-dense (rows, 128) slab.  Pad only when the element
    # count is not (8*128)-aligned; padded targets use ignore_label so they
    # never contribute.
    # TODO(synk): for large unaligned inputs this pad is still a full extra
    # HBM round trip; a fully zero-copy path would mask the ragged tail
    # in-kernel at element granularity instead.
    block_elems = _SUB * _LANE
    padded = pl.cdiv(total, block_elems) * block_elems
    pad = padded - total
    if pad:
        flat_p = jnp.pad(flat_p, (0, pad))
        flat_t = jnp.pad(flat_t, (0, pad), constant_values=float(ignore_label))

    rows = padded // _LANE                      # multiple of 8
    p2 = flat_p.reshape(rows, _LANE)
    t2 = flat_t.reshape(rows, _LANE)

    br = min(int(block_rows), rows)
    br = max(_SUB, (br // _SUB) * _SUB)         # multiple of 8
    grid = pl.cdiv(rows, br)
    mask_rows = (rows % br) != 0                # ragged last block -> iota mask

    kernel = partial(_bce_partial_kernel,
                     ignore_label=float(ignore_label),
                     block_rows=br, n_rows=rows, mask_rows=mask_rows)

    sum_out, cnt_out = pl.pallas_call(
        kernel,
        out_shape=(jax.ShapeDtypeStruct((grid * _SUB, _LANE), jnp.float32),
                   jax.ShapeDtypeStruct((grid * _SUB, _LANE), jnp.int32)),
        grid_spec=pltpu.PrefetchScalarGridSpec(
            num_scalar_prefetch=0,
            grid=(grid,),
            in_specs=[pl.BlockSpec((br, _LANE), lambda i: (i, 0)),
                      pl.BlockSpec((br, _LANE), lambda i: (i, 0))],
            out_specs=[pl.BlockSpec((_SUB, _LANE), lambda i: (i, 0)),
                       pl.BlockSpec((_SUB, _LANE), lambda i: (i, 0))]),
        compiler_params=pltpu.CompilerParams(
            dimension_semantics=("parallel",)),
    )(p2, t2)

    # Single, tiny final reduction of the per-block partials (done once,
    # outside the streaming loop).
    s = jnp.sum(sum_out)
    cnt = jnp.sum(cnt_out)                      # exact int32 count
    cnt_f = cnt.astype(jnp.float32)
    if size_average:
        return jnp.where(cnt > 0, s / jnp.maximum(cnt_f, 1.0), 0.0)
    return jnp.where(cnt > 0, s, 0.0)


def _reference(predict, target, size_average=True, ignore_label=255):
    p = predict.astype(jnp.float32).reshape(-1)
    t = target.astype(jnp.float32).reshape(-1)
    valid = jnp.logical_and(t >= 0.0, t != float(ignore_label))
    l = jnp.maximum(p, 0.0) - p * t + jnp.log1p(jnp.exp(-jnp.abs(p)))
    l = jnp.where(valid, l, 0.0)
    cnt = jnp.sum(valid.astype(jnp.float32))
    s = jnp.sum(l)
    if size_average:
        return jnp.where(cnt > 0, s / jnp.maximum(cnt, 1.0), 0.0)
    return jnp.where(cnt > 0, s, 0.0)


if __name__ == "__main__":
    key = jax.random.PRNGKey(0)

    def make_inputs(k, shape):
        kp, kt, km = jax.random.split(k, 3)
        predict = jax.random.normal(kp, shape, dtype=jnp.float32)
        target = jax.random.bernoulli(kt, 0.5, shape).astype(jnp.float32)
        ignore = jax.random.bernoulli(km, 0.2, shape)
        target = jnp.where(ignore, 255.0, target)
        return predict, target

    k1, k2, k3 = jax.random.split(key, 3)

    # Primary small case: (n, c, h, w) = (2, 1, 16, 16), single grid step.
    p1, t1 = make_inputs(k1, (2, 1, 16, 16))
    loss1 = jax.block_until_ready(
        bce_with_logits_loss_2d(p1, t1, size_average=True, ignore_label=255))
    ref1 = _reference(p1, t1)
    assert abs(float(loss1) - float(ref1)) < 1e-5, (float(loss1), float(ref1))

    # Multi-block grid, even division: 4096 elems, block_rows=8 -> grid=4.
    p2_, t2_ = make_inputs(k2, (2, 1, 32, 64))
    loss2 = jax.block_until_ready(
        bce_with_logits_loss_2d(p2_, t2_, block_rows=8))
    ref2 = _reference(p2_, t2_)
    assert abs(float(loss2) - float(ref2)) < 1e-5, (float(loss2), float(ref2))

    # Multi-block grid with overhanging last block (in-kernel row-mask path):
    # 5120 elems -> rows=40, block_rows=16 -> grid=3, 40 % 16 != 0.
    p3_, t3_ = make_inputs(k3, (2, 1, 40, 64))
    loss3 = jax.block_until_ready(
        bce_with_logits_loss_2d(p3_, t3_, block_rows=16))
    ref3 = _reference(p3_, t3_)
    assert abs(float(loss3) - float(ref3)) < 1e-5, (float(loss3), float(ref3))

    print("KERNEL_OK")
</pallas_src>

<mosaic_0001>
module attributes {stable_mosaic.version = 11 : i64} {
  func.func @_bce_partial_kernel(%arg0: i32, %arg1: memref<8x128xf32, #tpu.memory_space<vmem>>, %arg2: memref<8x128xf32, #tpu.memory_space<vmem>>, %arg3: memref<8x128xf32, #tpu.memory_space<vmem>>, %arg4: memref<8x128xi32, #tpu.memory_space<vmem>>) attributes {dimension_semantics = [#tpu.dimension_semantics<parallel>], iteration_bounds = array<i64: 1>, scalar_prefetch = 0 : i64, scratch_operands = 0 : i64, tpu.core_type = #tpu.core_type<tc>, window_params = [{transform_indices = @transform_0, window_bounds = array<i64: 8, 128>}, {transform_indices = @transform_1, window_bounds = array<i64: 8, 128>}, {transform_indices = @transform_2, window_bounds = array<i64: 8, 128>}, {transform_indices = @transform_3, window_bounds = array<i64: 8, 128>}]} {
    %c0 = arith.constant 0 : index
    %c0_0 = arith.constant 0 : index
    %0 = vector.load %arg1[%c0, %c0_0] : memref<8x128xf32, #tpu.memory_space<vmem>>, vector<8x128xf32>
    %c0_1 = arith.constant 0 : index
    %c0_2 = arith.constant 0 : index
    %1 = vector.load %arg2[%c0_1, %c0_2] : memref<8x128xf32, #tpu.memory_space<vmem>>, vector<8x128xf32>
    %cst = arith.constant 0.000000e+00 : f32
    %2 = vector.broadcast %cst : f32 to vector<8x128xf32>
    %3 = arith.cmpf oge, %1, %2 : vector<8x128xf32>
    %cst_3 = arith.constant 2.550000e+02 : f32
    %4 = vector.broadcast %cst_3 : f32 to vector<8x128xf32>
    %5 = arith.cmpf one, %1, %4 : vector<8x128xf32>
    %6 = arith.andi %3, %5 : vector<8x128xi1>
    %cst_4 = arith.constant 0.000000e+00 : f32
    %7 = vector.broadcast %cst_4 : f32 to vector<8x128xf32>
    %8 = arith.maximumf %0, %7 : vector<8x128xf32>
    %9 = arith.mulf %0, %1 : vector<8x128xf32>
    %10 = arith.subf %8, %9 : vector<8x128xf32>
    %11 = math.absf %0 : vector<8x128xf32>
    %cst_5 = arith.constant 0.000000e+00 : f32
    %12 = vector.broadcast %cst_5 : f32 to vector<8x128xf32>
    %13 = arith.subf %12, %11 : vector<8x128xf32>
    %14 = math.exp %13 : vector<8x128xf32>
    %15 = math.log1p %14 : vector<8x128xf32>
    %16 = arith.addf %10, %15 : vector<8x128xf32>
    %cst_6 = arith.constant 0.000000e+00 : f32
    %17 = vector.broadcast %cst_6 : f32 to vector<8x128xf32>
    %18 = arith.select %6, %16, %17 : vector<8x128xi1>, vector<8x128xf32>
    %19 = vector.shape_cast %18 : vector<8x128xf32> to vector<1x8x128xf32>
    %cst_7 = arith.constant dense<0.000000e+00> : vector<8x128xf32>
    %20 = vector.multi_reduction <add>, %19, %cst_7 [0] : vector<1x8x128xf32> to vector<8x128xf32>
    %c0_8 = arith.constant 0 : index
    %c0_9 = arith.constant 0 : index
    %21 = vector.load %arg3[%c0_8, %c0_9] : memref<8x128xf32, #tpu.memory_space<vmem>>, vector<8x128xf32>
    tpu.vector_store %arg3[%c0_8, %c0_9], %20 {strides = array<i32>} : memref<8x128xf32, #tpu.memory_space<vmem>>, vector<8x128xf32>,
    %22 = arith.extui %6 : vector<8x128xi1> to vector<8x128xi32>
    %23 = vector.shape_cast %22 : vector<8x128xi32> to vector<1x8x128xi32>
    %cst_10 = arith.constant dense<0> : vector<8x128xi32>
    %24 = vector.multi_reduction <add>, %23, %cst_10 [0] : vector<1x8x128xi32> to vector<8x128xi32>
    %c0_11 = arith.constant 0 : index
    %c0_12 = arith.constant 0 : index
    %25 = vector.load %arg4[%c0_11, %c0_12] : memref<8x128xi32, #tpu.memory_space<vmem>>, vector<8x128xi32>
    tpu.vector_store %arg4[%c0_11, %c0_12], %24 {strides = array<i32>} : memref<8x128xi32, #tpu.memory_space<vmem>>, vector<8x128xi32>,
    return
  }
  func.func @transform_0(%arg0: i32) -> (i32, i32) {
    %c0_i32 = arith.constant 0 : i32
    %c0_i32_0 = arith.constant 0 : i32
    return %arg0, %c0_i32 : i32, i32
  }
  func.func @transform_1(%arg0: i32) -> (i32, i32) {
    %c0_i32 = arith.constant 0 : i32
    %c0_i32_0 = arith.constant 0 : i32
    return %arg0, %c0_i32 : i32, i32
  }
  func.func @transform_2(%arg0: i32) -> (i32, i32) {
    %c0_i32 = arith.constant 0 : i32
    %c0_i32_0 = arith.constant 0 : i32
    return %arg0, %c0_i32 : i32, i32
  }
  func.func @transform_3(%arg0: i32) -> (i32, i32) {
    %c0_i32 = arith.constant 0 : i32
    %c0_i32_0 = arith.constant 0 : i32
    return %arg0, %c0_i32 : i32, i32
  }
}

</mosaic_0001>

<llo_original>
// kernel: tpu_custom_call.1
$region0: #{tpu_custom_call.1}
  #allocation0 [shape = 'u32[]', space=smem, size = 0x4, offset = 0x4, fixed_abs, tag = 'smem constant byte address 0x4 - core index']
  #allocation1 [shape = 'u32[144,128]{1,0:T(1,128)}', space=vmem, size = 0x12000, scoped, tag = 'internal scratch']
  %s0 = inlined_call_operand.hbm [shape: f32[8,128], index: 0, kind: input, shape index: {}]
  %s1 = inlined_call_operand.hbm [shape: f32[8,128], index: 1, kind: input, shape index: {}]
  %s2 = inlined_call_operand.hbm [shape: f32[8,128], index: 2, kind: output, shape index: {0}]
  %s3 = inlined_call_operand.hbm [shape: s32[8,128], index: 3, kind: output, shape index: {1}]
  %4 = xla_tuple %s2, %s3
  %s5 = sld [smem:[#allocation0]]
  $region34: #{tpu_custom_call.1} parent=0
    _
  %s7 = ssub.s32 1, %s5
  %s8 = scalar_select 0, %s7, %s5
  $region1: #{tpu_custom_call.1} parent=0
    #allocation2 [shape = 'u8[4096]{0}', space=vmem, size = 0x1000, scoped, tag = 'input window, operand 0, single buffered']
    #allocation3 [shape = 's32[1]{0}', space=sflag, size = 0x4, scoped, tag = 'scoped memory for tpu_custom_call.1']
    #allocation4 [shape = 's32[1]{0}', space=sflag, size = 0x4, scoped, tag = 'scoped memory for tpu_custom_call.1']
    #allocation5 [shape = 'u8[4096]{0}', space=vmem, size = 0x1000, scoped, tag = 'input window, operand 1, single buffered']
    #allocation6 [shape = 's32[1]{0}', space=sflag, size = 0x4, scoped, tag = 'scoped memory for tpu_custom_call.1']
    #allocation7 [shape = 'u8[4096]{0}', space=vmem, size = 0x1000, scoped, tag = 'output window, operand 0, single buffered']
    #allocation8 [shape = 'u8[4096]{0}', space=vmem, size = 0x1000, scoped, tag = 'output window, operand 1, single buffered']
    #allocation9 [shape = 's32[1]{0}', space=sflag, size = 0x4, scoped, tag = 'scoped memory for tpu_custom_call.1']
    %9 = vsyncpa [#allocation3], 0
    %10 = vsyncpa [#allocation6], 0
    %11 = vsyncpa [#allocation4], 0
    %12 = vsyncpa [#allocation9], 0
    // Predicated region
    $region2: #{tpu_custom_call.1} parent=1 // pred_check
      _
    $region3: #{tpu_custom_call.1} parent=1 // pred_check_branch
      %14 = sbr.rel (0) target = $region5
    $region4: #{tpu_custom_call.1} parent=1 // pred_region
      %s16 = ssub.s32 128, 128
      %17 = vsyncadd [#allocation3], %s16
      %s19 = sshll.u32 [#allocation2], 4
      %s20 = int_to_ptr.vmem [resolvable:$true] %s19
      %22 = dma.hbm_to_vmem [thread:$0]  %s0, 128, %s20, [#allocation3]
    $region5: #{tpu_custom_call.1} parent=1 // pred_fallthru
      _
    // Predicated region
    $region6: #{tpu_custom_call.1} parent=1 // pred_check
      _
    $region7: #{tpu_custom_call.1} parent=1 // pred_check_branch
      %24 = sbr.rel (0) target = $region9
    $region8: #{tpu_custom_call.1} parent=1 // pred_region
      %s26 = ssub.s32 128, 128
      %27 = vsyncadd [#allocation6], %s26
      %s29 = sshll.u32 [#allocation5], 4
      %s30 = int_to_ptr.vmem [resolvable:$true] %s29
      %32 = dma.hbm_to_vmem [thread:$0]  %s1, 128, %s30, [#allocation6]
    $region9: #{tpu_custom_call.1} parent=1 // pred_fallthru
      _
    // Predicated region
    $region10: #{tpu_custom_call.1} parent=1 // pred_check
      _
    $region11: #{tpu_custom_call.1} parent=1 // pred_check_branch
      %34 = sbr.rel (0) target = $region13
    $region12: #{tpu_custom_call.1} parent=1 // pred_region
      %35 = dma.done [#allocation3], 128
    $region13: #{tpu_custom_call.1} parent=1 // pred_fallthru
      _
    // Predicated region
    $region14: #{tpu_custom_call.1} parent=1 // pred_check
      _
    $region15: #{tpu_custom_call.1} parent=1 // pred_check_branch
      %37 = sbr.rel (0) target = $region17
    $region16: #{tpu_custom_call.1} parent=1 // pred_region
      %38 = dma.done [#allocation6], 128
    $region17: #{tpu_custom_call.1} parent=1 // pred_fallthru
      _
    %v39 = vld [vmem:[#allocation2] sm:$0xff]
    %v40 = vld [vmem:[#allocation5] sm:$0xff]
    %vm41 = vcmp.ge.f32.partialorder %v40, 0.0
    %vm42 = vcmp.ne.f32.partialorder %v40, 255.0
    %vm43 = vmand %vm41, %vm42
    %v44 = vmax.f32 %v39, 0.0
    %v45 = vmul.f32 %v39, %v40
    %v46 = vsub.f32 %v44, %v45
    %v47 = vand.u32 2147483647, %v39
    %v48 = vsub.f32 0.0, %v47
    %v49 = vmul.f32 %v48, 1.442695
    %v50 = vpow.pop %v49
    %v51 = vadd.f32 %v50, 1.0
    %v52 = vlog2.pop %v51
    %v53 = vmul.f32 %v52, 0.6931472
    %v54 = vmul.f32 -0.5, %v50
    %v55 = vadd.f32 %v54, 1.0
    %v56 = vmul.f32 %v55, %v50
    %v57 = vand.u32 2147483647, %v50
    %vm58 = vcmp.lt.f32.partialorder %v57, 0.0004427343
    %v59 = vsel %vm58, %v56, %v53
    %v60 = vadd.f32 %v46, %v59
    %v61 = vsel %vm43, %v60, 0.0
    %v62 = vadd.f32 %v61, 0.0
    %63 = vst [vmem:[#allocation7] sm:$0xff] %v62
    %v64 = vsel %vm43, 1, 0
    %65 = vst [vmem:[#allocation8] sm:$0xff] %v64
    // Predicated region
    $region18: #{tpu_custom_call.1} parent=1 // pred_check
      _
    $region19: #{tpu_custom_call.1} parent=1 // pred_check_branch
      %67 = sbr.rel (0) target = $region21
    $region20: #{tpu_custom_call.1} parent=1 // pred_region
      %s69 = ssub.s32 128, 128
      %70 = vsyncadd [#allocation4], %s69
      %s72 = sshll.u32 [#allocation7], 4
      %s73 = int_to_ptr.vmem [resolvable:$true] %s72
      %75 = dma.vmem_to_hbm [thread:$0]  %s73, 128, %s2, [#allocation4]
    $region21: #{tpu_custom_call.1} parent=1 // pred_fallthru
      _
    // Predicated region
    $region22: #{tpu_custom_call.1} parent=1 // pred_check
      _
    $region23: #{tpu_custom_call.1} parent=1 // pred_check_branch
      %77 = sbr.rel (0) target = $region25
    $region24: #{tpu_custom_call.1} parent=1 // pred_region
      %s79 = ssub.s32 128, 128
      %80 = vsyncadd [#allocation9], %s79
      %s82 = sshll.u32 [#allocation8], 4
      %s83 = int_to_ptr.vmem [resolvable:$true] %s82
      %85 = dma.vmem_to_hbm [thread:$0]  %s83, 128, %s3, [#allocation9]
    $region25: #{tpu_custom_call.1} parent=1 // pred_fallthru
      _
    // Predicated region
    $region26: #{tpu_custom_call.1} parent=1 // pred_check
      _
    $region27: #{tpu_custom_call.1} parent=1 // pred_check_branch
      %87 = sbr.rel (0) target = $region29
    $region28: #{tpu_custom_call.1} parent=1 // pred_region
      %88 = dma.done [#allocation4], 128
    $region29: #{tpu_custom_call.1} parent=1 // pred_fallthru
      _
    // Predicated region
    $region30: #{tpu_custom_call.1} parent=1 // pred_check
      _
    $region31: #{tpu_custom_call.1} parent=1 // pred_check_branch
      %90 = sbr.rel (0) target = $region33
    $region32: #{tpu_custom_call.1} parent=1 // pred_region
      %91 = dma.done [#allocation9], 128
    $region33: #{tpu_custom_call.1} parent=1 // pred_fallthru
      _
    %92 = vsyncpa [#allocation3], 1
    %93 = vsyncpa [#allocation6], 1
    %94 = vsyncpa [#allocation4], 1
    %95 = vsyncpa [#allocation9], 1

</llo_original>
